<compile_context>
chip_gen: v7x
topology: tpu7x:2x2x1
jax: 0.10.0
libtpu: 0.0.40
codegen_flags: <defaults>
</compile_context>

<pallas_src>
import functools

import numpy as np
import jax
import jax.numpy as jnp
from jax.experimental import pallas as pl
from jax.experimental.pallas import tpu as pltpu


def _round_up(x, m):
    return (x + m - 1) // m * m


# ----------------------------------------------------------------------------
# Gabor filter bank weight construction (deterministic, mirrors gabor_kernel)
# ----------------------------------------------------------------------------
def gabor_kernel_np(frequency, sigma_x, sigma_y, theta=0.0, offset=0.0, ks=7):
    w = ks // 2
    grid_val = np.arange(-w, w + 1, dtype=np.float32)
    # torch.meshgrid default is 'ij' indexing
    x, y = np.meshgrid(grid_val, grid_val, indexing="ij")
    rotx = x * np.cos(theta) + y * np.sin(theta)
    roty = -x * np.sin(theta) + y * np.cos(theta)
    g = np.exp(-0.5 * (rotx ** 2 / sigma_x ** 2 + roty ** 2 / sigma_y ** 2))
    g /= 2 * np.pi * sigma_x * sigma_y
    g *= np.cos(2 * np.pi * frequency * rotx + offset)
    return g.astype(np.float32)


def build_gfb_weight(in_channels, out_channels, kernel_size, key):
    """Deterministic synthetic GFB.initialize(): one gabor per output channel,
    placed in a (deterministically) random input channel."""
    oc = out_channels
    sf = np.linspace(0.1, 0.4, oc, dtype=np.float32)
    theta = np.linspace(0.0, np.pi, oc, endpoint=False, dtype=np.float32)
    sigx = np.linspace(1.5, 3.0, oc, dtype=np.float32)
    sigy = np.linspace(2.0, 3.5, oc, dtype=np.float32)
    phase = np.linspace(0.0, np.pi / 2, oc, dtype=np.float32)
    random_channel = np.asarray(
        jax.random.randint(key, (oc,), 0, in_channels, dtype=jnp.int32)
    )
    weight = np.zeros((oc, in_channels, kernel_size, kernel_size), dtype=np.float32)
    for i in range(oc):
        weight[i, random_channel[i]] = gabor_kernel_np(
            frequency=sf[i], sigma_x=sigx[i], sigma_y=sigy[i],
            theta=theta[i], offset=phase[i], ks=kernel_size,
        )
    return jnp.asarray(weight)


# ----------------------------------------------------------------------------
# Pallas matmul kernel:  out[M, OCp] = A[M, K] @ W[OCp, K]^T  (f32 accumulate)
# ----------------------------------------------------------------------------
def _matmul_kernel(a_ref, w_ref, o_ref):
    # a_ref: [tm, tk], w_ref: [tn, tk], o_ref: [tm, tn] (resident across k).
    # Contract K on both operands -> the MXU consumes the "transposed" RHS
    # natively, so the weight never needs an HBM transpose.
    part = jax.lax.dot_general(
        a_ref[...], w_ref[...],
        dimension_numbers=(((1,), (1,)), ((), ())),
        preferred_element_type=jnp.float32,
    )
    k = pl.program_id(2)

    @pl.when(k == 0)
    def _store():
        o_ref[...] = part

    @pl.when(k > 0)
    def _accum():
        o_ref[...] += part


def _fits_vmem(tm, tk, tn, budget_bytes):
    # double-buffered A + double-buffered W + double-buffered output, f32
    return 4 * (2 * tm * tk + 2 * tn * tk + 2 * tm * tn) <= budget_bytes


def pallas_matmul_nt(a, w, *, tm_max=512, tn_max=512, tk_max=1024,
                     vmem_budget_bytes=24 * 1024 * 1024):
    """a: [M, K] f32, w: [OCp, K] f32 (OCp % 128 == 0)  ->  [M, OCp] f32 = a @ w.T"""
    M, K = a.shape
    OCp, K2 = w.shape
    assert K == K2 and OCp % 128 == 0

    # ---- N tile: whole OCp resident unless OC is large (bounds VMEM on v7x).
    tn = OCp if OCp <= tn_max else tn_max          # multiple of 128 either way
    num_n = pl.cdiv(OCp, tn)

    # ---- M tile: MXU-sized, and >=2 blocks whenever possible so the
    #      "parallel" axis can shard across v7x's two TensorCores.
    if M < 16:
        tm = M                                      # full dim -> layout-legal
    else:
        tm = min(tm_max, _round_up(pl.cdiv(M, 2), 8))

    # ---- K handling: prefer one full-K block (weight fetched once and kept
    #      VMEM-resident, no accumulation loop).  Shrink tm before resorting
    #      to K tiling so the weight residency is preserved.
    tk, num_k = K, 1
    while not _fits_vmem(tm, tk, tn, vmem_budget_bytes) and tm > 128:
        tm = _round_up(tm // 2, 8)
    if not _fits_vmem(tm, tk, tn, vmem_budget_bytes):
        # Cold path for GFB shapes (needs C*KH*KW in the many thousands):
        # tile K and zero-pad the contraction dim on BOTH operands so clipped
        # tail blocks can never feed garbage into valid accumulator rows.
        tk = tk_max
        num_k = pl.cdiv(K, tk)
        Kp = num_k * tk
        a = jnp.pad(a, ((0, 0), (0, Kp - K)))
        w = jnp.pad(w, ((0, 0), (0, Kp - K)))

    num_m = pl.cdiv(M, tm)
    Kp = a.shape[1]

    # Advisory cost estimate, reflecting padded shapes and the fetch pattern:
    # A is refetched per N tile when K is tiled; W is fetched once when it is
    # resident (num_n == num_k == 1), otherwise roughly once per M tile.
    flops = 2 * M * Kp * OCp
    a_bytes = 4 * M * Kp * (1 if num_k == 1 else num_n)
    w_bytes = 4 * OCp * Kp * (1 if (num_k == 1 and num_n == 1) else num_m)
    bytes_accessed = a_bytes + w_bytes + 4 * M * OCp

    return pl.pallas_call(
        _matmul_kernel,
        out_shape=jax.ShapeDtypeStruct((M, OCp), jnp.float32),
        grid_spec=pltpu.PrefetchScalarGridSpec(
            num_scalar_prefetch=0,
            grid=(num_m, num_n, num_k),               # reduction axis last
            in_specs=[
                pl.BlockSpec((tm, tk), lambda i, n, k: (i, k)),
                # Constant over the M axis -> fetched once / kept resident in
                # the common (num_n == num_k == 1) GFB case.
                pl.BlockSpec((tn, tk), lambda i, n, k: (n, k)),
            ],
            out_specs=pl.BlockSpec((tm, tn), lambda i, n, k: (i, n)),
        ),
        compiler_params=pltpu.CompilerParams(
            dimension_semantics=("parallel", "parallel", "arbitrary"),
            vmem_limit_bytes=32 * 1024 * 1024,
        ),
        cost_estimate=pl.CostEstimate(
            flops=flops, transcendentals=0, bytes_accessed=bytes_accessed),
    )(a, w)


# ----------------------------------------------------------------------------
# GFB forward: F.conv2d(x, weight, None, stride, padding)
#   = im2col (NHWC strided slices, no big transpose) + Pallas matmul
# ----------------------------------------------------------------------------
@functools.partial(jax.jit, static_argnums=(2, 3))
def gfb_forward(x, weight, stride, padding):
    """x: [B, C, H, W] f32, weight: [OC, C, KH, KW] f32 -> [B, OC, OH, OW] f32."""
    B, C, H, W = x.shape
    OC, _, KH, KW = weight.shape
    sh, sw = stride
    ph, pw = padding
    OH = (H + 2 * ph - KH) // sh + 1
    OW = (W + 2 * pw - KW) // sw + 1

    # --- glue: NHWC once (pass over the raw input only), pad, then im2col via
    #     static strided slices.  Slabs come out [B, OH, OW, C], so a plain
    #     stack+reshape gives A=[M, K] with K=(kh, kw, c) -- no transpose over
    #     the expanded MxK matrix.
    xh = jnp.transpose(x, (0, 2, 3, 1)).astype(jnp.float32)   # [B, H, W, C]
    xp = jnp.pad(xh, ((0, 0), (ph, ph), (pw, pw), (0, 0)))
    slabs = []
    for kh in range(KH):
        for kw in range(KW):
            slabs.append(jax.lax.slice(
                xp,
                (0, kh, kw, 0),
                (B, kh + (OH - 1) * sh + 1, kw + (OW - 1) * sw + 1, C),
                (1, sh, sw, 1)))                     # [B, OH, OW, C]
    pat = jnp.stack(slabs, axis=3)                   # [B, OH, OW, KH*KW, C]
    K = C * KH * KW
    a = pat.reshape(B * OH * OW, K)                  # K ordered (kh, kw, c)

    # --- weight: permute the *tiny* matrix to the same (kh, kw, c) ordering,
    #     zero-pad OC so the kernel's output tile is lane-dense (128 for the
    #     tiny-OC GFB config, 256-multiples once OC > 128 for v6e/v7x MXUs).
    OCp = 128 if OC <= 128 else _round_up(OC, 256)
    wmat = jnp.transpose(weight, (0, 2, 3, 1)).reshape(OC, K).astype(jnp.float32)
    wmat = jnp.pad(wmat, ((0, OCp - OC), (0, 0)))

    out = pallas_matmul_nt(a, wmat)                  # [M, OCp]

    # [M, OCp] -> [B, OC, OH, OW]  (slice+reshape+transpose fuse into one copy)
    return out[:, :OC].reshape(B, OH, OW, OC).transpose(0, 3, 1, 2)


if __name__ == "__main__":
    # Module config (consistent with GFB(in_channels, out_channels, kernel_size, stride)):
    in_channels, out_channels, kernel_size, stride = 4, 8, 7, 4
    padding = kernel_size // 2

    key = jax.random.PRNGKey(0)
    kx, kw = jax.random.split(key)
    x = jax.random.normal(kx, (2, in_channels, 16, 16), dtype=jnp.float32)
    weight = build_gfb_weight(in_channels, out_channels, kernel_size, kw)

    y = gfb_forward(x, weight, (stride, stride), (padding, padding))
    y = jax.block_until_ready(y)

    # Reference check against XLA's conv (same semantics as F.conv2d, NCHW/OIHW)
    y_ref = jax.lax.conv_general_dilated(
        x, weight,
        window_strides=(stride, stride),
        padding=((padding, padding), (padding, padding)),
        dimension_numbers=("NCHW", "OIHW", "NCHW"),
    )
    np.testing.assert_allclose(np.asarray(y), np.asarray(y_ref), rtol=1e-4, atol=1e-4)

    print("KERNEL_OK")
</pallas_src>

<mosaic_0001>
module attributes {stable_mosaic.version = 11 : i64} {
  func.func @_matmul_kernel(%arg0: i32, %arg1: i32, %arg2: i32, %arg3: memref<16x196xf32, #tpu.memory_space<vmem>>, %arg4: memref<128x196xf32, #tpu.memory_space<vmem>>, %arg5: memref<16x128xf32, #tpu.memory_space<vmem>>) attributes {dimension_semantics = [#tpu.dimension_semantics<parallel>, #tpu.dimension_semantics<parallel>, #tpu.dimension_semantics<arbitrary>], iteration_bounds = array<i64: 2, 1, 1>, scalar_prefetch = 0 : i64, scratch_operands = 0 : i64, tpu.core_type = #tpu.core_type<tc>, window_params = [{transform_indices = @transform_0, window_bounds = array<i64: 16, 196>}, {transform_indices = @transform_1, window_bounds = array<i64: 128, 196>}, {transform_indices = @transform_2, window_bounds = array<i64: 16, 128>}]} {
    %c0 = arith.constant 0 : index
    %c0_0 = arith.constant 0 : index
    %0 = vector.load %arg3[%c0, %c0_0] : memref<16x196xf32, #tpu.memory_space<vmem>>, vector<16x196xf32>
    %c0_1 = arith.constant 0 : index
    %c0_2 = arith.constant 0 : index
    %1 = vector.load %arg4[%c0_1, %c0_2] : memref<128x196xf32, #tpu.memory_space<vmem>>, vector<128x196xf32>
    %cst = arith.constant dense<0.000000e+00> : vector<16x128xf32>
    %2 = tpu.matmul %0, %1, %cst {dimension_numbers = #tpu.dot_dimension_numbers<[1], [1], [0], [0], [0, 0, 1, 0], [], []>} : vector<16x196xf32>, vector<128x196xf32>, vector<16x128xf32> -> vector<16x128xf32>
    %c0_i32 = arith.constant 0 : i32
    %3 = arith.cmpi eq, %arg2, %c0_i32 : i32
    %4 = arith.extui %3 : i1 to i32
    %c0_i32_3 = arith.constant 0 : i32
    %5 = arith.cmpi ne, %4, %c0_i32_3 : i32
    scf.if %5 {
      %c0_6 = arith.constant 0 : index
      %c0_7 = arith.constant 0 : index
      %9 = vector.load %arg5[%c0_6, %c0_7] : memref<16x128xf32, #tpu.memory_space<vmem>>, vector<16x128xf32>
      tpu.vector_store %arg5[%c0_6, %c0_7], %2 {strides = array<i32>} : memref<16x128xf32, #tpu.memory_space<vmem>>, vector<16x128xf32>,
    } else {
    }
    %c0_i32_4 = arith.constant 0 : i32
    %6 = arith.cmpi sgt, %arg2, %c0_i32_4 : i32
    %7 = arith.extui %6 : i1 to i32
    %c0_i32_5 = arith.constant 0 : i32
    %8 = arith.cmpi ne, %7, %c0_i32_5 : i32
    scf.if %8 {
      %c0_6 = arith.constant 0 : index
      %c0_7 = arith.constant 0 : index
      %9 = vector.load %arg5[%c0_6, %c0_7] : memref<16x128xf32, #tpu.memory_space<vmem>>, vector<16x128xf32>
      %10 = arith.addf %9, %2 : vector<16x128xf32>
      %c0_8 = arith.constant 0 : index
      %c0_9 = arith.constant 0 : index
      %11 = vector.load %arg5[%c0_8, %c0_9] : memref<16x128xf32, #tpu.memory_space<vmem>>, vector<16x128xf32>
      tpu.vector_store %arg5[%c0_8, %c0_9], %10 {strides = array<i32>} : memref<16x128xf32, #tpu.memory_space<vmem>>, vector<16x128xf32>,
    } else {
    }
    return
  }
  func.func @transform_0(%arg0: i32, %arg1: i32, %arg2: i32) -> (i32, i32) {
    %c0_i32 = arith.constant 0 : i32
    return %arg0, %arg2 : i32, i32
  }
  func.func @transform_1(%arg0: i32, %arg1: i32, %arg2: i32) -> (i32, i32) {
    %c0_i32 = arith.constant 0 : i32
    return %arg1, %arg2 : i32, i32
  }
  func.func @transform_2(%arg0: i32, %arg1: i32, %arg2: i32) -> (i32, i32) {
    %c0_i32 = arith.constant 0 : i32
    return %arg0, %arg1 : i32, i32
  }
}

</mosaic_0001>

<llo_original>
// kernel: gfb_forward.1
$region0: #{gfb_forward.1}
  #allocation0 [shape = 'u32[]', space=smem, size = 0x4, offset = 0x4, fixed_abs, tag = 'smem constant byte address 0x4 - core index']
  #allocation1 [shape = 'u32[144,128]{1,0:T(1,128)}', space=vmem, size = 0x12000, scoped, tag = 'internal scratch']
  %s0 = inlined_call_operand.vmem [shape: f32[32,196], index: 0, kind: input, shape index: {}]
  %s1 = inlined_call_operand.vmem [shape: f32[128,196], index: 1, kind: input, shape index: {}]
  %s2 = inlined_call_operand.hbm [shape: f32[32,128], index: 2, kind: output, shape index: {}]
  %s3 = sld [smem:[#allocation0]]
  $region49: #{gfb_forward.1} parent=0
    _
  %s5 = ssub.s32 1, %s3
  %s6 = scalar_select 0, %s5, %s3
  $region1: #{gfb_forward.1} parent=0
    #allocation2 [shape = 'u8[16384]{0}', space=vmem, size = 0x4000, scoped, tag = 'output window, operand 0']
    #allocation3 [shape = 's32[2]{0}', space=sflag, size = 0x8, scoped, tag = 'scoped memory for gfb_forward.1']
    %7 = vsyncpa [#allocation3], 0
    %s8 = scalar_lea.sflag [#allocation3], 1
    %9 = vsyncpa %s8, 0
    loop: start=0, step=1, limit=4
    $region2: #{gfb_forward.1} parent=1 // loop_pre_header
      _
    $region3: #{gfb_forward.1} parent=1 // loop_header
      %s11 = sphi 0, %s15
      %p12 = scmp.ge.s32.totalorder %s11, 4
      %s18 = sphi 0, %s37
      %s19 = sphi 0, %s33
      %s20 = sphi 0, %s29
      %s21 = sphi 0, %s18
      %s22 = sphi 0, %s19
      %s23 = sphi 0, %s20
      %s24 = sphi 0, %s21
      %s25 = sphi 0, %s22
      %s26 = sphi 0, %s23
      %s42 = sphi 0, %s44
      %s45 = sphi 0, %s42
      %s46 = sphi 0, %s45
      %s62 = sphi 0, %s46
      %s70 = sphi 0, %s72
      %s73 = sphi 0, %s70
      %s74 = sphi 0, %s73
      %s90 = sphi 0, %s74
      %s98 = sphi 0, %s100
      %s101 = sphi 0, %s98
      %s102 = sphi 0, %s101
      %s118 = sphi 0, %s102
    $region4: #{gfb_forward.1} parent=1 // loop_header_branch
      %14 = sbr.rel (%p12) target = $region8
    $region5: #{gfb_forward.1} parent=1 // loop_body
      %s16 = ssub.s32 %s11, 1
      %s17 = ssub.s32 %s11, 2
      %s27 = sadd.s32 1, %s20
      %p28 = scmp.ge.s32.totalorder %s27, 1
      %s29 = scalar_select %p28, 0, %s27
      %s30 = sadd.s32 1, %s19
      %s31 = scalar_select %p28, %s30, %s19
      %p32 = scmp.ge.s32.totalorder %s31, 1
      %s33 = scalar_select %p32, 0, %s31
      %s34 = sadd.s32 1, %s18
      %s35 = scalar_select %p32, %s34, %s18
      %p36 = scmp.ge.s32.totalorder %s35, 2
      %s37 = scalar_select %p36, 0, %s35
      %s38 = ssub.s32 %s18, %s37
      %s39 = ssub.s32 %s20, %s29
      %s40 = sor.u32 %s38, %s39
      %p41 = scmp.eq.s32.totalorder %s40, 0
      %s43 = sadd.s32 %s42, 1
      %s44 = scalar_select %p41, %s42, %s43
      %p47 = pneg %p41
      %p48 = scmp.eq.s32.totalorder %s11, 1
      %p49 = por %p47, %p48
      %p50 = scmp.ne.s32.totalorder %s42, %s45
      %p51 = scmp.eq.s32.totalorder %s11, 0
      %p52 = por %p50, %p51
      %p53 = scmp.ne.s32.totalorder %s42, %s45
      %p54 = scmp.eq.s32.totalorder %s16, 1
      %p55 = por %p53, %p54
      %p56 = scmp.ne.s32.totalorder %s45, %s46
      %p57 = scmp.eq.s32.totalorder %s16, 0
      %p58 = por %p56, %p57
      %p59 = scmp.ne.s32.totalorder %s45, %s46
      %p60 = scmp.eq.s32.totalorder %s17, 1
      %p61 = por %p59, %p60
      %p63 = scmp.ne.s32.totalorder %s46, %s62
      %p64 = scmp.eq.s32.totalorder %s17, 0
      %p65 = por %p63, %p64
      %s66 = ssub.s32 %s19, %s33
      %s67 = ssub.s32 %s20, %s29
      %s68 = sor.u32 %s66, %s67
      %p69 = scmp.eq.s32.totalorder %s68, 0
      %s71 = sadd.s32 %s70, 1
      %s72 = scalar_select %p69, %s70, %s71
      %p75 = pneg %p69
      %p76 = scmp.eq.s32.totalorder %s11, 1
      %p77 = por %p75, %p76
      %p78 = scmp.ne.s32.totalorder %s70, %s73
      %p79 = scmp.eq.s32.totalorder %s11, 0
      %p80 = por %p78, %p79
      %p81 = scmp.ne.s32.totalorder %s70, %s73
      %p82 = scmp.eq.s32.totalorder %s16, 1
      %p83 = por %p81, %p82
      %p84 = scmp.ne.s32.totalorder %s73, %s74
      %p85 = scmp.eq.s32.totalorder %s16, 0
      %p86 = por %p84, %p85
      %p87 = scmp.ne.s32.totalorder %s73, %s74
      %p88 = scmp.eq.s32.totalorder %s17, 1
      %p89 = por %p87, %p88
      %p91 = scmp.ne.s32.totalorder %s74, %s90
      %p92 = scmp.eq.s32.totalorder %s17, 0
      %p93 = por %p91, %p92
      %s94 = ssub.s32 %s18, %s37
      %s95 = ssub.s32 %s19, %s33
      %s96 = sor.u32 %s94, %s95
      %p97 = scmp.eq.s32.totalorder %s96, 0
      %s99 = sadd.s32 %s98, 1
      %s100 = scalar_select %p97, %s98, %s99
      %p103 = pneg %p97
      %p104 = scmp.eq.s32.totalorder %s11, 1
      %p105 = por %p103, %p104
      %p106 = scmp.ne.s32.totalorder %s98, %s101
      %p107 = scmp.eq.s32.totalorder %s11, 0
      %p108 = por %p106, %p107
      %p109 = scmp.ne.s32.totalorder %s98, %s101
      %p110 = scmp.eq.s32.totalorder %s16, 1
      %p111 = por %p109, %p110
      %p112 = scmp.ne.s32.totalorder %s101, %s102
      %p113 = scmp.eq.s32.totalorder %s16, 0
      %p114 = por %p112, %p113
      %p115 = scmp.ne.s32.totalorder %s101, %s102
      %p116 = scmp.eq.s32.totalorder %s17, 1
      %p117 = por %p115, %p116
      %p119 = scmp.ne.s32.totalorder %s102, %s118
      %p120 = scmp.eq.s32.totalorder %s17, 0
      %p121 = por %p119, %p120
      %p122 = scmp.le.s32.totalorder 1, %s11
      %p123 = scmp.lt.s32.totalorder %s11, 3
      %p124 = pnand %p122, %p123
      %p125 = pneg %p124
      // Predicated region
      $region9: #{gfb_forward.1} parent=5 // pred_check
        _
      $region10: #{gfb_forward.1} parent=5 // pred_check_branch
        %127 = sbr.rel (%p124) target = $region12
      $region11: #{gfb_forward.1} parent=5 // pred_region
        %s128 = ssub.s32 %s11, 1
        // Predicated region
        $region13: #{gfb_forward.1} parent=11 // pred_check
          %p129 = pneg %p86
        $region14: #{gfb_forward.1} parent=11 // pred_check_branch
          %131 = sbr.rel (%p129) target = $region16
        $region15: #{gfb_forward.1} parent=11 // pred_region
          %s132 = smul.u32 16, %s22
          %s133 = smul.u32 2, %s23
          %p134 = scmp.lt.s32.totalorder %s132, 15
          %s135 = scalar_select %p134, %s132, 15
          %p136 = scmp.lt.s32.totalorder %s133, 1
          %s137 = scalar_select %p136, %s133, 1
          %s138 = smul.addr %s135, 2
          %s139 = sadd.s32 %s137, %s138
          %s140 = smul.addr %s139, 8
          %s141 = scalar_lea.vmem %s1, %s140
          %s142 = smul.u32 16, %s22
          %s143 = smul.u32 2, %s23
        $region16: #{gfb_forward.1} parent=11 // pred_fallthru
          _
      $region12: #{gfb_forward.1} parent=5 // pred_fallthru
        _
      %p144 = scmp.lt.s32.totalorder %s11, 2
      // Predicated region
      $region17: #{gfb_forward.1} parent=5 // pred_check
        %p145 = pneg %p144
      $region18: #{gfb_forward.1} parent=5 // pred_check_branch
        %147 = sbr.rel (%p145) target = $region20
      $region19: #{gfb_forward.1} parent=5 // pred_region
        // Predicated region
        $region21: #{gfb_forward.1} parent=19 // pred_check
          %p148 = pneg %p52
        $region22: #{gfb_forward.1} parent=19 // pred_check_branch
          %150 = sbr.rel (%p148) target = $region24
        $region23: #{gfb_forward.1} parent=19 // pred_region
          %s151 = smul.u32 2, %s18
          %s152 = smul.u32 2, %s20
          %p153 = scmp.lt.s32.totalorder %s151, 3
          %s154 = scalar_select %p153, %s151, 3
          %p155 = scmp.lt.s32.totalorder %s152, 1
          %s156 = scalar_select %p155, %s152, 1
          %s157 = smul.addr %s154, 2
          %s158 = sadd.s32 %s156, %s157
          %s159 = smul.addr %s158, 8
          %s160 = scalar_lea.vmem %s0, %s159
          %s161 = smul.u32 2, %s18
          %s162 = smul.u32 2, %s20
        $region24: #{gfb_forward.1} parent=19 // pred_fallthru
          _
      $region20: #{gfb_forward.1} parent=5 // pred_fallthru
        _
      %p163 = scmp.le.s32.totalorder 1, %s11
      %p164 = scmp.lt.s32.totalorder %s11, 3
      %p165 = pnand %p163, %p164
      %p166 = pneg %p165
      // Predicated region
      $region25: #{gfb_forward.1} parent=5 // pred_check
        _
      $region26: #{gfb_forward.1} parent=5 // pred_check_branch
        %168 = sbr.rel (%p165) target = $region28
      $region27: #{gfb_forward.1} parent=5 // pred_region
        %s169 = ssub.s32 %s11, 1
        %s170 = smul.u32 2, %s21
        %s171 = smul.u32 2, %s23
        %p172 = scmp.lt.s32.totalorder %s170, 3
        %s173 = scalar_select %p172, %s170, 3
        %p174 = scmp.lt.s32.totalorder %s171, 1
        %s175 = scalar_select %p174, %s171, 1
        %s176 = smul.addr %s173, 2
        %s177 = sadd.s32 %s175, %s176
        %s178 = smul.addr %s177, 8
        %s179 = scalar_lea.vmem %s0, %s178
        %p180 = pneg %p58
        %p181 = pneg %p55
        %s182 = smul.u32 16, %s22
        %s183 = smul.u32 2, %s23
        %p184 = scmp.lt.s32.totalorder %s182, 15
        %s185 = scalar_select %p184, %s182, 15
        %p186 = scmp.lt.s32.totalorder %s183, 1
        %s187 = scalar_select %p186, %s183, 1
        %s188 = smul.addr %s185, 2
        %s189 = sadd.s32 %s187, %s188
        %s190 = smul.addr %s189, 8
        %s191 = scalar_lea.vmem %s1, %s190
        %p192 = pneg %p86
        %p193 = pneg %p83
        %p194 = pneg %p114
        %p195 = pneg %p111
        %s196 = sand.u32 %s101, 1
        %s197 = scalar_lea.sflag [#allocation3], %s196
        %s198 = sand.u32 %s101, 1
        %s199 = smul.addr %s198, 16
        %s200 = scalar_lea.vmem [#allocation2], %s199
        %s201 = smul.u32 2, %s21
        %s202 = smul.u32 2, %s23
        %p203 = scmp.lt.s32.totalorder %s201, 3
        %s204 = scalar_select %p203, %s201, 3
        %p205 = scmp.lt.s32.totalorder %s202, 1
        %s206 = scalar_select %p205, %s202, 1
        %s207 = smul.addr %s204, 2
        %s208 = sadd.s32 %s206, %s207
        %s209 = smul.addr %s208, 8
        %s210 = scalar_lea.vmem %s0, %s209
        %s211 = smul.u32 2, %s21
        %s212 = smul.u32 2, %s23
        %s213 = smul.u32 16, %s22
        %s214 = smul.u32 2, %s23
        %p215 = scmp.lt.s32.totalorder %s213, 15
        %s216 = scalar_select %p215, %s213, 15
        %p217 = scmp.lt.s32.totalorder %s214, 1
        %s218 = scalar_select %p217, %s214, 1
        %s219 = smul.addr %s216, 2
        %s220 = sadd.s32 %s218, %s219
        %s221 = smul.addr %s220, 8
        %s222 = scalar_lea.vmem %s1, %s221
        %s223 = smul.u32 16, %s22
        %s224 = smul.u32 2, %s23
        %s225 = smul.u32 2, %s21
        %v226 = vld [vmem:[%s210] sm:$0xff]
        %v227 = vld [vmem:[%s210 + $0x8] sm:$0xff]
        %v228 = vld [vmem:[%s210 + $0x10] sm:$0xff]
        %v229 = vld [vmem:[%s210 + $0x18] sm:$0xff]
        %v230 = vld [vmem:[%s222] sm:$0xff]
        %v231 = vld [vmem:[%s222 + $0x8] sm:$0xff]
        %v232 = vld [vmem:[%s222 + $0x10] sm:$0xff]
        %v233 = vld [vmem:[%s222 + $0x18] sm:$0xff]
        %v234 = vld [vmem:[%s222 + $0x20] sm:$0xff]
        %v235 = vld [vmem:[%s222 + $0x28] sm:$0xff]
        %v236 = vld [vmem:[%s222 + $0x30] sm:$0xff]
        %v237 = vld [vmem:[%s222 + $0x38] sm:$0xff]
        %v238 = vld [vmem:[%s222 + $0x40] sm:$0xff]
        %v239 = vld [vmem:[%s222 + $0x48] sm:$0xff]
        %v240 = vld [vmem:[%s222 + $0x50] sm:$0xff]
        %v241 = vld [vmem:[%s222 + $0x58] sm:$0xff]
        %v242 = vld [vmem:[%s222 + $0x60] sm:$0xff]
        %v243 = vld [vmem:[%s222 + $0x68] sm:$0xff]
        %v244 = vld [vmem:[%s222 + $0x70] sm:$0xff]
        %v245 = vld [vmem:[%s222 + $0x78] sm:$0xff]
        %v246 = vld [vmem:[%s222 + $0x80] sm:$0xff]
        %v247 = vld [vmem:[%s222 + $0x88] sm:$0xff]
        %v248 = vld [vmem:[%s222 + $0x90] sm:$0xff]
        %v249 = vld [vmem:[%s222 + $0x98] sm:$0xff]
        %v250 = vld [vmem:[%s222 + $0xa0] sm:$0xff]
        %v251 = vld [vmem:[%s222 + $0xa8] sm:$0xff]
        %v252 = vld [vmem:[%s222 + $0xb0] sm:$0xff]
        %v253 = vld [vmem:[%s222 + $0xb8] sm:$0xff]
        %v254 = vld [vmem:[%s222 + $0xc0] sm:$0xff]
        %v255 = vld [vmem:[%s222 + $0xc8] sm:$0xff]
        %v256 = vld [vmem:[%s222 + $0xd0] sm:$0xff]
        %v257 = vld [vmem:[%s222 + $0xd8] sm:$0xff]
        %v258 = vld [vmem:[%s222 + $0xe0] sm:$0xff]
        %v259 = vld [vmem:[%s222 + $0xe8] sm:$0xff]
        %v260 = vld [vmem:[%s222 + $0xf0] sm:$0xff]
        %v261 = vld [vmem:[%s222 + $0xf8] sm:$0xff]
        %vm262 = vcmask 556032
        %v264 = vsel %vm262, %v227, 0
        %v267 = vsel %vm262, %v229, 0
        %v270 = vsel %vm262, %v231, 0
        %v273 = vsel %vm262, %v233, 0
        %v276 = vsel %vm262, %v235, 0
        %v279 = vsel %vm262, %v237, 0
        %v282 = vsel %vm262, %v239, 0
        %v285 = vsel %vm262, %v241, 0
        %v288 = vsel %vm262, %v243, 0
        %v291 = vsel %vm262, %v245, 0
        %v294 = vsel %vm262, %v247, 0
        %v297 = vsel %vm262, %v249, 0
        %v300 = vsel %vm262, %v251, 0
        %v303 = vsel %vm262, %v253, 0
        %v306 = vsel %vm262, %v255, 0
        %v309 = vsel %vm262, %v257, 0
        %v312 = vsel %vm262, %v259, 0
        %v315 = vsel %vm262, %v261, 0
        %317 = vmatprep.subr.mxu0 %v270
        %318 = vmatpush1.xpose.msra.mxu0 %v230
        %319 = vmatprep.subr.mxu0 %v273
        %320 = vmatpush1.xpose.msra.mxu0 %v232
        %321 = vmatprep.subr.mxu0 %v276
        %322 = vmatpush1.xpose.msra.mxu0 %v234
        %323 = vmatprep.subr.mxu0 %v279
        %324 = vmatpush1.xpose.msra.mxu0 %v236
        %325 = vmatprep.subr.mxu0 %v282
        %326 = vmatpush1.xpose.msra.mxu0 %v238
        %327 = vmatprep.subr.mxu0 %v285
        %328 = vmatpush1.xpose.msra.mxu0 %v240
        %329 = vmatprep.subr.mxu0 %v288
        %330 = vmatpush1.xpose.msra.mxu0 %v242
        %331 = vmatprep.subr.mxu0 %v291
        %332 = vmatpush1.xpose.msra.mxu0 %v244
        %333 = vmatprep.subr.mxu0 %v294
        %334 = vmatpush1.xpose.msra.mxu0 %v246
        %335 = vmatprep.subr.mxu0 %v297
        %336 = vmatpush1.xpose.msra.mxu0 %v248
        %337 = vmatprep.subr.mxu0 %v300
        %338 = vmatpush1.xpose.msra.mxu0 %v250
        %339 = vmatprep.subr.mxu0 %v303
        %340 = vmatpush1.xpose.msra.mxu0 %v252
        %341 = vmatprep.subr.mxu0 %v306
        %342 = vmatpush1.xpose.msra.mxu0 %v254
        %343 = vmatprep.subr.mxu0 %v309
        %344 = vmatpush1.xpose.msra.mxu0 %v256
        %345 = vmatprep.subr.mxu0 %v312
        %346 = vmatpush1.xpose.msra.mxu0 %v258
        %347 = vmatprep.subr.mxu0 %v315
        %348 = vmatpush1.xpose.msra.mxu0 %v260
        %349 = vmatprep.subr.mxu0 0.0
        %350 = vmatpush1.xpose.msra.mxu0 0.0
        %351 = vmatprep.subr.mxu0 0.0
        %352 = vmatpush1.xpose.msra.mxu0 0.0
        %353 = vmatprep.subr.mxu0 0.0
        %354 = vmatpush1.xpose.msra.mxu0 0.0
        %355 = vmatprep.subr.mxu0 0.0
        %356 = vmatpush1.xpose.msra.mxu0 0.0
        %357 = vmatprep.subr.mxu0 0.0
        %358 = vmatpush1.xpose.msra.mxu0 0.0
        %359 = vmatprep.subr.mxu0 0.0
        %360 = vmatpush1.xpose.msra.mxu0 0.0
        %361 = vmatprep.subr.mxu0 0.0
        %362 = vmatpush1.xpose.msra.mxu0 0.0
        %363 = vmatprep.subr.mxu0 0.0
        %364 = vmatpush1.xpose.msra.mxu0 0.0
        %365 = vmatprep.subr.mxu0 0.0
        %366 = vmatpush1.xpose.msra.mxu0 0.0
        %367 = vmatprep.subr.mxu0 0.0
        %368 = vmatpush1.xpose.msra.mxu0 0.0
        %369 = vmatprep.subr.mxu0 0.0
        %370 = vmatpush1.xpose.msra.mxu0 0.0
        %371 = vmatprep.subr.mxu0 0.0
        %372 = vmatpush1.xpose.msra.mxu0 0.0
        %373 = vmatprep.subr.mxu0 0.0
        %374 = vmatpush1.xpose.msra.mxu0 0.0
        %375 = vmatprep.subr.mxu0 0.0
        %376 = vmatpush1.xpose.msra.mxu0 0.0
        %377 = vmatprep.subr.mxu0 0.0
        %378 = vmatpush1.xpose.msra.mxu0 0.0
        %379 = vmatprep.subr.mxu0 0.0
        %380 = vmatpush1.xpose.msra.mxu0 0.0
        %381 = vmatprep.mubr.f32.mxu0 %v264
        %382 = vmatmul.mubr.f32.gmra.mrb[0].mxu0 %v226
        %v383 = vpop.f32.mrb[0].mxu0
        %v384 = vadd.f32 0.0, %v383
        %v385 = vpop.f32.mrb[0].mxu0
        %386 = vmatprep.mubr.f32.mxu0 %v267
        %387 = vmatmul.mubr.f32.gmra.mrb[0].mxu0 %v228
        %v388 = vpop.f32.mrb[0].mxu0
        %v389 = vadd.f32 0.0, %v388
        %v390 = vpop.f32.mrb[0].mxu0
        %391 = vdwg.mxu0
        %p392 = scmp.eq.s32.totalorder %s23, 0
        // Predicated region
        $region29: #{gfb_forward.1} parent=27 // pred_check
          %p393 = pneg %p392
        $region30: #{gfb_forward.1} parent=27 // pred_check_branch
          %395 = sbr.rel (%p393) target = $region32
        $region31: #{gfb_forward.1} parent=27 // pred_region
          %396 = vst [vmem:[%s200] sm:$0xff] %v384
          %397 = vst [vmem:[%s200 + $0x8] sm:$0xff] %v389
        $region32: #{gfb_forward.1} parent=27 // pred_fallthru
          _
        %p398 = scmp.gt.s32.totalorder %s23, 0
        // Predicated region
        $region33: #{gfb_forward.1} parent=27 // pred_check
          %p399 = pneg %p398
        $region34: #{gfb_forward.1} parent=27 // pred_check_branch
          %401 = sbr.rel (%p399) target = $region36
        $region35: #{gfb_forward.1} parent=27 // pred_region
          %v402 = vld [vmem:[%s200] sm:$0xff]
          %v403 = vld [vmem:[%s200 + $0x8] sm:$0xff]
          %v404 = vadd.f32 %v402, %v384
          %v405 = vadd.f32 %v403, %v389
          %406 = vst [vmem:[%s200] sm:$0xff] %v404
          %407 = vst [vmem:[%s200 + $0x8] sm:$0xff] %v405
        $region36: #{gfb_forward.1} parent=27 // pred_fallthru
          _
        %s408 = sand.u32 %s101, 1
        %s409 = scalar_lea.sflag [#allocation3], %s408
        %s410 = sand.u32 %s101, 1
        %s411 = smul.addr %s410, 16
        %s412 = scalar_lea.vmem [#allocation2], %s411
        // Predicated region
        $region37: #{gfb_forward.1} parent=27 // pred_check
          %p413 = pneg %p111
        $region38: #{gfb_forward.1} parent=27 // pred_check_branch
          %415 = sbr.rel (%p413) target = $region40
        $region39: #{gfb_forward.1} parent=27 // pred_region
          %s416 = smul.u32 2, %s21
          %s418 = ssub.s32 256, 256
          %419 = vsyncadd %s409, %s418
          %s420 = sadd.s32 %s22, %s416
          %s421 = smul.addr %s420, 128
          %s422 = scalar_lea.hbm %s2, %s421
          %s423 = sshll.u32 %s412, 4
          %s424 = int_to_ptr.vmem [resolvable:$true] %s423
          %429 = dma.vmem_to_hbm [thread:$0]  %s424, 256, %s422, %s409, 128, 128, 8
        $region40: #{gfb_forward.1} parent=27 // pred_fallthru
          _
      $region28: #{gfb_forward.1} parent=5 // pred_fallthru
        _
      %p430 = scmp.le.s32.totalorder 2, %s11
      // Predicated region
      $region41: #{gfb_forward.1} parent=5 // pred_check
        %p431 = pneg %p430
      $region42: #{gfb_forward.1} parent=5 // pred_check_branch
        %433 = sbr.rel (%p431) target = $region44
      $region43: #{gfb_forward.1} parent=5 // pred_region
        %s434 = ssub.s32 %s11, 2
        // Predicated region
        $region45: #{gfb_forward.1} parent=43 // pred_check
          %p435 = pneg %p117
        $region46: #{gfb_forward.1} parent=43 // pred_check_branch
          %437 = sbr.rel (%p435) target = $region48
        $region47: #{gfb_forward.1} parent=43 // pred_region
          %s438 = sand.u32 %s102, 1
          %s439 = scalar_lea.sflag [#allocation3], %s438
          %s440 = sand.u32 %s102, 1
          %s441 = smul.addr %s440, 16
          %s442 = scalar_lea.vmem [#allocation2], %s441
          %443 = dma.done %s439, 256
        $region48: #{gfb_forward.1} parent=43 // pred_fallthru
          _
      $region44: #{gfb_forward.1} parent=5 // pred_fallthru
        _
    $region6: #{gfb_forward.1} parent=1 // loop_footer
      %s15 = sadd.s32 1, %s11
    $region7: #{gfb_forward.1} parent=1 // loop_footer_branch
      %10 = sbr.rel target = $region3
    $region8: #{gfb_forward.1} parent=1 // loop_exit
      _
    %444 = vsyncpa [#allocation3], 1
    %s445 = scalar_lea.sflag [#allocation3], 1
    %446 = vsyncpa %s445, 1

</llo_original>
